<compile_context>
chip_gen: v7x
topology: tpu7x:2x2x1
jax: 0.10.0
libtpu: 0.0.40
codegen_flags: <defaults>
</compile_context>

<pallas_src>
import functools

import numpy as np
import jax
import jax.numpy as jnp
from jax.experimental import pallas as pl
from jax.experimental.pallas import tpu as pltpu


def _ldam_kernel(out_ref, tgt_ref, m_ref, loss_ref, *, s):
    x = out_ref[...].astype(jnp.float32)          # (TILE_N, C)
    tgt = tgt_ref[...]                            # (TILE_N, 1) int32
    m = m_ref[...].astype(jnp.float32)            # (1, C)

    tn, c = x.shape
    col = jax.lax.broadcasted_iota(jnp.int32, (tn, c), 1)
    onehot = col == tgt                           # (TILE_N, C) one-hot of target

    # Margin only affects the target column:
    #   where(onehot, x - m[target], x) == x - where(onehot, m, 0)
    z = s * (x - jnp.where(onehot, m, 0.0))       # (TILE_N, C)

    # Per-sample cross entropy (reduction='none', no class weight):
    #   loss = logsumexp(z) - z[target]
    zmax = jnp.max(z, axis=-1, keepdims=True)
    lse = zmax + jnp.log(jnp.sum(jnp.exp(z - zmax), axis=-1, keepdims=True))
    z_t = jnp.sum(jnp.where(onehot, z, 0.0), axis=-1, keepdims=True)

    loss_ref[...] = (lse - z_t).astype(loss_ref.dtype)   # (TILE_N, 1)


def _round_up(x, mult):
    return ((x + mult - 1) // mult) * mult


def _choose_tile_n(n, c):
    # Keep one logits block around ~2 MiB (f32-equivalent) so that the
    # double-buffered input plus the f32 intermediates (z, exp(z - zmax),
    # masks) stay well under the 32 MiB VMEM limit on v5e / v6e / v7x.
    budget_bytes = 2 * 1024 * 1024
    max_rows = max(8, budget_bytes // max(1, c * 4))
    tile = min(1024, max_rows, _round_up(n, 8))
    return max(8, (tile // 8) * 8)


@functools.partial(jax.jit, static_argnames=("s", "tile_n"))
def ldam_loss(output, target, m_list, *, s=30.0, tile_n=None):
    """output: (N, C) f32/bf16 logits; target: (N,) int; m_list: (C,) f32.
    Returns per-sample loss of shape (N,) f32 (reduction='none', as the module)."""
    n, c = output.shape
    tgt2d = target.reshape(n, 1).astype(jnp.int32)
    m2d = m_list.reshape(1, c).astype(jnp.float32)

    tile = tile_n if tile_n is not None else _choose_tile_n(n, c)
    num_tiles = -(-n // tile)
    n_pad = num_tiles * tile
    if n_pad != n:
        # Pad the batch; padded rows (zero logits, class 0) are sliced off below.
        output = jnp.pad(output, ((0, n_pad - n), (0, 0)))
        tgt2d = jnp.pad(tgt2d, ((0, n_pad - n), (0, 0)))

    kernel = functools.partial(_ldam_kernel, s=float(s))
    loss = pl.pallas_call(
        kernel,
        out_shape=jax.ShapeDtypeStruct((n_pad, 1), jnp.float32),
        grid=(num_tiles,),
        in_specs=[
            pl.BlockSpec((tile, c), lambda i: (i, 0)),   # logits tile
            pl.BlockSpec((tile, 1), lambda i: (i, 0)),   # targets tile
            pl.BlockSpec((1, c), lambda i: (0, 0)),      # m_list (resident)
        ],
        out_specs=pl.BlockSpec((tile, 1), lambda i: (i, 0)),
        compiler_params=pltpu.CompilerParams(
            dimension_semantics=("parallel",),
            vmem_limit_bytes=32 * 1024 * 1024,
        ),
    )(output, tgt2d, m2d)
    return loss[:n, 0]


def make_m_list(cls_num_list, max_m=0.5):
    m = 1.0 / np.sqrt(np.sqrt(np.asarray(cls_num_list, dtype=np.float64)))
    m = m * (max_m / np.max(m))
    return jnp.asarray(m, dtype=jnp.float32)


def _reference(output, target, m_list, s=30.0):
    # pure-JAX reference for sanity checking
    N, C = output.shape
    onehot = jax.nn.one_hot(target, C, dtype=jnp.float32)
    batch_m = (onehot * m_list[None, :]).sum(-1, keepdims=True)
    z = s * jnp.where(onehot.astype(bool), output - batch_m, output)
    return jax.nn.logsumexp(z, axis=-1) - jnp.take_along_axis(
        z, target[:, None], axis=-1).squeeze(-1)


if __name__ == "__main__":
    key = jax.random.PRNGKey(0)
    N, C = 8, 32  # batch, num classes

    # deterministic long-tailed class counts for m_list construction
    cls_num_list = [int(1000 * (0.9 ** i)) + 1 for i in range(C)]
    m_list = make_m_list(cls_num_list, max_m=0.5)

    k1, k2 = jax.random.split(key)
    output = jax.random.normal(k1, (N, C), dtype=jnp.float32)
    target = jax.random.randint(k2, (N,), 0, C, dtype=jnp.int32)

    loss = ldam_loss(output, target, m_list, s=30.0)
    jax.block_until_ready(loss)
    ref = _reference(output, target, m_list, s=30.0)
    assert loss.shape == (N,)
    assert jnp.allclose(loss, ref, atol=1e-4, rtol=1e-4), (loss, ref)

    # Exercise the multi-tile grid + batch padding path (N not a tile multiple).
    N2 = 20
    k3, k4 = jax.random.split(k2)
    out2 = jax.random.normal(k3, (N2, C), dtype=jnp.float32)
    tgt2 = jax.random.randint(k4, (N2,), 0, C, dtype=jnp.int32)
    loss2 = ldam_loss(out2, tgt2, m_list, s=30.0, tile_n=8)
    jax.block_until_ready(loss2)
    ref2 = _reference(out2, tgt2, m_list, s=30.0)
    assert loss2.shape == (N2,)
    assert jnp.allclose(loss2, ref2, atol=1e-4, rtol=1e-4), (loss2, ref2)

    # bf16 logits path (halves HBM traffic; kernel upcasts to f32 internally).
    out_bf = output.astype(jnp.bfloat16)
    loss_bf = ldam_loss(out_bf, target, m_list, s=30.0)
    jax.block_until_ready(loss_bf)
    ref_bf = _reference(out_bf.astype(jnp.float32), target, m_list, s=30.0)
    assert jnp.allclose(loss_bf, ref_bf, atol=1e-2, rtol=1e-3), (loss_bf, ref_bf)

    print("KERNEL_OK")
</pallas_src>

<mosaic_0001>
module attributes {stable_mosaic.version = 11 : i64} {
  func.func @_ldam_kernel(%arg0: i32, %arg1: memref<8x32xf32, #tpu.memory_space<vmem>>, %arg2: memref<8x1xi32, #tpu.memory_space<vmem>>, %arg3: memref<1x32xf32, #tpu.memory_space<vmem>>, %arg4: memref<8x1xf32, #tpu.memory_space<vmem>>) attributes {dimension_semantics = [#tpu.dimension_semantics<parallel>], iteration_bounds = array<i64: 1>, scalar_prefetch = 0 : i64, scratch_operands = 0 : i64, tpu.core_type = #tpu.core_type<tc>, window_params = [{transform_indices = @transform_0, window_bounds = array<i64: 8, 32>}, {transform_indices = @transform_1, window_bounds = array<i64: 8, 1>}, {pipeline_mode = #tpu.pipeline_mode<synchronous>, transform_indices = @transform_2, window_bounds = array<i64: 1, 32>}, {transform_indices = @transform_3, window_bounds = array<i64: 8, 1>}]} {
    %c0 = arith.constant 0 : index
    %c0_0 = arith.constant 0 : index
    %0 = vector.load %arg1[%c0, %c0_0] : memref<8x32xf32, #tpu.memory_space<vmem>>, vector<8x32xf32>
    %c0_1 = arith.constant 0 : index
    %c0_2 = arith.constant 0 : index
    %1 = vector.load %arg2[%c0_1, %c0_2] : memref<8x1xi32, #tpu.memory_space<vmem>>, vector<8x1xi32>
    %c0_3 = arith.constant 0 : index
    %c0_4 = arith.constant 0 : index
    %2 = vector.load %arg3[%c0_3, %c0_4] : memref<1x32xf32, #tpu.memory_space<vmem>>, vector<1x32xf32>
    %3 = tpu.iota {dimensions = array<i32: 1>} : vector<8x32xi32>
    %4 = vector.broadcast %1 : vector<8x1xi32> to vector<8x32xi32>
    %5 = arith.cmpi eq, %3, %4 : vector<8x32xi32>
    %cst = arith.constant 0.000000e+00 : f32
    %6 = vector.shape_cast %2 : vector<1x32xf32> to vector<1x32xf32>
    %7 = vector.broadcast %6 : vector<1x32xf32> to vector<8x32xf32>
    %8 = vector.broadcast %cst : f32 to vector<8x32xf32>
    %9 = arith.select %5, %7, %8 : vector<8x32xi1>, vector<8x32xf32>
    %10 = arith.subf %0, %9 : vector<8x32xf32>
    %cst_5 = arith.constant 3.000000e+01 : f32
    %11 = vector.broadcast %cst_5 : f32 to vector<8x32xf32>
    %12 = arith.mulf %11, %10 : vector<8x32xf32>
    %cst_6 = arith.constant dense<0xFF800000> : vector<8xf32>
    %13 = vector.multi_reduction <maximumf>, %12, %cst_6 [1] : vector<8x32xf32> to vector<8xf32>
    %14 = vector.shape_cast %13 : vector<8xf32> to vector<8x1xf32>
    %15 = vector.broadcast %14 : vector<8x1xf32> to vector<8x32xf32>
    %16 = arith.subf %12, %15 : vector<8x32xf32>
    %17 = math.exp %16 : vector<8x32xf32>
    %cst_7 = arith.constant dense<0.000000e+00> : vector<8xf32>
    %18 = vector.multi_reduction <add>, %17, %cst_7 [1] : vector<8x32xf32> to vector<8xf32>
    %19 = vector.shape_cast %18 : vector<8xf32> to vector<8x1xf32>
    %20 = math.log %19 : vector<8x1xf32>
    %21 = arith.addf %14, %20 : vector<8x1xf32>
    %cst_8 = arith.constant 0.000000e+00 : f32
    %22 = vector.broadcast %cst_8 : f32 to vector<8x32xf32>
    %23 = arith.select %5, %12, %22 : vector<8x32xi1>, vector<8x32xf32>
    %cst_9 = arith.constant dense<0.000000e+00> : vector<8xf32>
    %24 = vector.multi_reduction <add>, %23, %cst_9 [1] : vector<8x32xf32> to vector<8xf32>
    %25 = vector.shape_cast %24 : vector<8xf32> to vector<8x1xf32>
    %26 = arith.subf %21, %25 : vector<8x1xf32>
    %c0_10 = arith.constant 0 : index
    %c0_11 = arith.constant 0 : index
    %27 = vector.load %arg4[%c0_10, %c0_11] : memref<8x1xf32, #tpu.memory_space<vmem>>, vector<8x1xf32>
    tpu.vector_store %arg4[%c0_10, %c0_11], %26 {strides = array<i32>} : memref<8x1xf32, #tpu.memory_space<vmem>>, vector<8x1xf32>,
    return
  }
  func.func @transform_0(%arg0: i32) -> (i32, i32) {
    %c0_i32 = arith.constant 0 : i32
    %c0_i32_0 = arith.constant 0 : i32
    return %arg0, %c0_i32 : i32, i32
  }
  func.func @transform_1(%arg0: i32) -> (i32, i32) {
    %c0_i32 = arith.constant 0 : i32
    %c0_i32_0 = arith.constant 0 : i32
    return %arg0, %c0_i32 : i32, i32
  }
  func.func @transform_2(%arg0: i32) -> (i32, i32) {
    %c0_i32 = arith.constant 0 : i32
    %c0_i32_0 = arith.constant 0 : i32
    %c0_i32_1 = arith.constant 0 : i32
    return %c0_i32, %c0_i32_0 : i32, i32
  }
  func.func @transform_3(%arg0: i32) -> (i32, i32) {
    %c0_i32 = arith.constant 0 : i32
    %c0_i32_0 = arith.constant 0 : i32
    return %arg0, %c0_i32 : i32, i32
  }
}

</mosaic_0001>

<llo_original>
// kernel: ldam_loss.1
$region0: #{ldam_loss.1}
  #allocation0 [shape = 'u32[]', space=smem, size = 0x4, offset = 0x4, fixed_abs, tag = 'smem constant byte address 0x4 - core index']
  #allocation1 [shape = 'u32[144,128]{1,0:T(1,128)}', space=vmem, size = 0x12000, scoped, tag = 'internal scratch']
  %s0 = inlined_call_operand.vmem [shape: f32[8,32], index: 0, kind: input, shape index: {}]
  %s1 = inlined_call_operand.vmem [shape: s32[8,1], index: 1, kind: input, shape index: {}]
  %s2 = inlined_call_operand.vmem [shape: f32[1,32], index: 2, kind: input, shape index: {}]
  %s3 = inlined_call_operand.vmem [shape: f32[8,1], index: 3, kind: output, shape index: {}]
  %s4 = sld [smem:[#allocation0]]
  $region22: #{ldam_loss.1} parent=0
    _
  %s6 = ssub.s32 1, %s4
  %s7 = scalar_select 0, %s6, %s4
  // Predicated region
  $region2: #{ldam_loss.1} parent=0 // pred_check
    _
  $region3: #{ldam_loss.1} parent=0 // pred_check_branch
    %9 = sbr.rel (0) target = $region5
  $region4: #{ldam_loss.1} parent=0 // pred_region
    _
  $region5: #{ldam_loss.1} parent=0 // pred_fallthru
    _
  // Predicated region
  $region6: #{ldam_loss.1} parent=0 // pred_check
    _
  $region7: #{ldam_loss.1} parent=0 // pred_check_branch
    %11 = sbr.rel (0) target = $region9
  $region8: #{ldam_loss.1} parent=0 // pred_region
    _
  $region9: #{ldam_loss.1} parent=0 // pred_fallthru
    _
  // Predicated region
  $region10: #{ldam_loss.1} parent=0 // pred_check
    _
  $region11: #{ldam_loss.1} parent=0 // pred_check_branch
    %13 = sbr.rel (0) target = $region13
  $region12: #{ldam_loss.1} parent=0 // pred_region
    _
  $region13: #{ldam_loss.1} parent=0 // pred_fallthru
    _
  %v14 = vld [vmem:[%s0] sm:$0xff]
  %v15 = vld [vmem:[%s1] sm:$0xff]
  %v16 = vld [vmem:[%s2] sm:$0x1]
  %v17 = vlaneseq
  %v18 = vand.u32 %v17, 127
  %19 = vset.pattern.permute.xlu0 0
  %20 = vperm.xlu0 %19, %v15
  %v21 = vpop.permute.xlu0 %20
  %vm22 = vcmp.eq.s32.totalorder %v18, %v21
  %v24 = vlaneseq
  %v25 = vshrl.u32 %v24, 7
  %v26 = vsub.s32 0, %v25
  %v27 = vrot.slane %v16, %v26
  %v29 = vsel %vm22, %v27, 0.0
  %v30 = vsub.f32 %v14, %v29
  %v31 = vmul.f32 %v30, 30.0
  %vm32 = vcmask 261120
  %v33 = vsel %vm32, %v31, -inf
  %34 = vmax.xlane.f32.xlu0 %v33
  %v35 = vpop.xlane.xlu0 %34
  %v36 = vsub.f32 %v31, %v35
  %v37 = vmul.f32 %v36, 1.442695
  %v38 = vpow.pop %v37
  %v39 = vsel %vm32, %v38, 0.0
  %40 = vadd.xlane.f32.xlu0 %v39
  %v41 = vpop.xlane.xlu0 %40
  %v42 = vlog2.pop %v41
  %v43 = vmul.f32 %v42, 0.6931472
  %v44 = vadd.f32 %v35, %v43
  %v45 = vsel %vm22, %v31, 0.0
  %v46 = vsel %vm32, %v45, 0.0
  %47 = vadd.xlane.f32.xlu0 %v46
  %v48 = vpop.xlane.xlu0 %47
  %v49 = vsub.f32 %v44, %v48
  %vm50 = vcmask 7168
  %51 = vst.msk [vmem:[%s3] sm:$0xff] %vm50, %v49
  // Predicated region
  $region14: #{ldam_loss.1} parent=0 // pred_check
    _
  $region15: #{ldam_loss.1} parent=0 // pred_check_branch
    %53 = sbr.rel (0) target = $region17
  $region16: #{ldam_loss.1} parent=0 // pred_region
    _
  $region17: #{ldam_loss.1} parent=0 // pred_fallthru
    _
  // Predicated region
  $region18: #{ldam_loss.1} parent=0 // pred_check
    _
  $region19: #{ldam_loss.1} parent=0 // pred_check_branch
    %55 = sbr.rel (0) target = $region21
  $region20: #{ldam_loss.1} parent=0 // pred_region
    _
  $region21: #{ldam_loss.1} parent=0 // pred_fallthru
    _

</llo_original>
